<compile_context>
chip_gen: v6e
topology: v6e:2x2x1
jax: 0.10.0
libtpu: 0.0.40
codegen_flags: <defaults>
</compile_context>

<pallas_src>
import functools

import jax
import jax.numpy as jnp
from jax.experimental import pallas as pl
from jax.experimental.pallas import tpu as pltpu

LANES = 128          # vreg lane width (hardware constant)
BLOCK_ROWS = 4096    # sublane rows per grid step: 4096*128*4B = 2 MiB f32/input


def _pow_int(base, k):
    """base ** k (integer k >= 1) by exponentiation-by-squaring.

    No jnp.ones_like seed (JAX does not CSE broadcast_in_dim); gamma=2 lowers
    to a single multiply.
    """
    result = None
    while k:
        if k & 1:
            result = base if result is None else result * base
        k >>= 1
        if k:
            base = base * base
    return result


def _focal_coeff(one_m_pt, gamma):
    """(1 - pt) ** gamma; returns None when gamma == 0 (coeff == 1)."""
    g = float(gamma)
    if g == 0.0:
        return None
    if g.is_integer() and 0 < g <= 16:
        return _pow_int(one_m_pt, int(g))
    return jnp.power(one_m_pt, jnp.float32(g))


def _focal_kernel(gamma, rows_total, block_rows, has_ragged,
                  pred_ref, targ_ref, psum_ref, pcnt_ref):
    x = pred_ref[...].astype(jnp.float32)   # logits
    z = targ_ref[...].astype(jnp.float32)   # targets

    # Shared transcendental: e = exp(-|x|).
    e = jnp.exp(-jnp.abs(x))

    # BCEWithLogitsLoss (reduction='none'), numerically stable:
    #   max(x, 0) - x*z + log(1 + exp(-|x|))
    ce = jnp.maximum(x, 0.0) - x * z + jnp.log1p(e)

    # sigmoid(x): r = 1/(1+e); p = r for x >= 0 else 1 - r.
    # Approx EUP reciprocal (otherwise-idle slot) + one Newton step (3 VALU
    # ops) instead of a full f32 divide on the VALU.
    d = 1.0 + e
    r = pl.reciprocal(d, approx=True)
    r = r * (2.0 - d * r)
    p = jnp.where(x >= 0.0, r, 1.0 - r)

    # 1 - pt = 1 - (z*p + (1-z)*(1-p)) = p + z - 2*p*z
    one_m_pt = (p + z) - 2.0 * (p * z)

    coeff = _focal_coeff(one_m_pt, gamma)
    fl = ce if coeff is None else ce * coeff

    finite = jnp.logical_not(jnp.isnan(fl))   # nanmean: exclude NaN elements

    def write(valid):
        psum_ref[...] = jnp.sum(jnp.where(valid, fl, 0.0), axis=0,
                                keepdims=True).reshape(1, 1, LANES)
        pcnt_ref[...] = jnp.sum(valid.astype(jnp.int32), axis=0,
                                keepdims=True).reshape(1, 1, LANES)

    if has_ragged:
        i = pl.program_id(0)
        is_last = i == pl.num_programs(0) - 1

        @pl.when(jnp.logical_not(is_last))
        def _():
            write(finite)

        @pl.when(is_last)
        def _():
            # Only the last block can be ragged: mask rows past the array end.
            rem = rows_total - i * block_rows          # scalar, block-local
            row = jax.lax.broadcasted_iota(jnp.int32, finite.shape, 0)
            write(jnp.logical_and(finite, row < rem))
    else:
        write(finite)


def focal_loss(pred, target, gamma=2.0):
    assert pred.shape == target.shape
    n = pred.size

    pf = pred.reshape(-1)
    tf = target.reshape(-1)

    n_main = (n // LANES) * LANES    # 128-aligned prefix handled by the kernel
    tail = n - n_main                # <= 127 elems handled by a jnp epilogue

    total_sum = jnp.float32(0.0)
    total_cnt = jnp.int32(0)

    if n_main > 0:
        rows = n_main // LANES
        # Free reshape when n is lane-aligned (typical NCHW sizes); otherwise a
        # prefix slice — no NaN-pad / dtype copies of the old revision.
        pm = pf[:n_main].reshape(rows, LANES)
        tm = tf[:n_main].reshape(rows, LANES)

        br = min(BLOCK_ROWS, rows)          # full extent for small inputs
        grid = pl.cdiv(rows, br)
        has_ragged = (rows % br) != 0       # only then emit the iota mask path

        kernel = functools.partial(_focal_kernel, float(gamma), rows, br,
                                   has_ragged)

        in_bytes = pm.size * pm.dtype.itemsize + tm.size * tm.dtype.itemsize
        cost = pl.CostEstimate(
            flops=25 * n_main,
            transcendentals=3 * n_main,     # exp, log1p, reciprocal
            bytes_accessed=in_bytes + 2 * grid * LANES * 4,
        )

        psum, pcnt = pl.pallas_call(
            kernel,
            out_shape=(jax.ShapeDtypeStruct((grid, 1, LANES), jnp.float32),
                       jax.ShapeDtypeStruct((grid, 1, LANES), jnp.int32)),
            grid=(grid,),
            in_specs=[pl.BlockSpec((br, LANES), lambda i: (i, 0)),
                      pl.BlockSpec((br, LANES), lambda i: (i, 0))],
            out_specs=(pl.BlockSpec((1, 1, LANES), lambda i: (i, 0, 0)),
                       pl.BlockSpec((1, 1, LANES), lambda i: (i, 0, 0))),
            compiler_params=pltpu.CompilerParams(
                dimension_semantics=("parallel",)),
            cost_estimate=cost,
        )(pm, tm)

        total_sum = total_sum + jnp.sum(psum)
        total_cnt = total_cnt + jnp.sum(pcnt)

    if tail > 0:
        # Tiny (<128 element) epilogue instead of a full-array pad copy.
        xt = pf[n_main:].astype(jnp.float32)
        zt = tf[n_main:].astype(jnp.float32)
        et = jnp.exp(-jnp.abs(xt))
        cet = jnp.maximum(xt, 0.0) - xt * zt + jnp.log1p(et)
        pt_p = jax.nn.sigmoid(xt)
        one_m_pt = (pt_p + zt) - 2.0 * (pt_p * zt)
        coeff = _focal_coeff(one_m_pt, gamma)
        flt = cet if coeff is None else cet * coeff
        finite = jnp.logical_not(jnp.isnan(flt))
        total_sum = total_sum + jnp.sum(jnp.where(finite, flt, 0.0))
        total_cnt = total_cnt + jnp.sum(finite.astype(jnp.int32))

    # nanmean = sum(valid) / count(valid); 0/0 -> NaN matches torch semantics.
    return total_sum / total_cnt.astype(jnp.float32)


def focal_loss_ref(pred, target, gamma=2.0):
    x = pred.astype(jnp.float32)
    z = target.astype(jnp.float32)
    ce = jnp.maximum(x, 0.0) - x * z + jnp.log1p(jnp.exp(-jnp.abs(x)))
    p = jax.nn.sigmoid(x)
    pt = z * p + (1.0 - z) * (1.0 - p)
    fl = ce * (1.0 - pt) ** gamma
    return jnp.nanmean(fl)


if __name__ == "__main__":
    key = jax.random.PRNGKey(0)
    gamma = 2.0

    # Primary test: small NCHW-like inputs (module spec), lane-aligned size.
    k1, k2 = jax.random.split(key)
    pred = jax.random.normal(k1, (2, 4, 16, 16), dtype=jnp.float32)
    target = jax.random.bernoulli(k2, 0.5, (2, 4, 16, 16)).astype(jnp.float32)
    out = jax.block_until_ready(focal_loss(pred, target, gamma=gamma))
    ref = focal_loss_ref(pred, target, gamma=gamma)
    assert jnp.allclose(out, ref, rtol=1e-4, atol=1e-6), (out, ref)

    # Non-lane-aligned size + real NaNs (nanmean semantics + tail epilogue).
    k3, k4 = jax.random.split(k1)
    pred2 = jax.random.normal(k3, (2, 3, 37, 53), dtype=jnp.float32)
    pred2 = pred2.at[0, 1, 5, 7].set(jnp.nan).at[1, 2, 30, 40].set(jnp.nan)
    target2 = jax.random.bernoulli(k4, 0.5, (2, 3, 37, 53)).astype(jnp.float32)
    out2 = jax.block_until_ready(focal_loss(pred2, target2, gamma=gamma))
    ref2 = focal_loss_ref(pred2, target2, gamma=gamma)
    assert jnp.allclose(out2, ref2, rtol=1e-4, atol=1e-6), (out2, ref2)

    # Multi-block grid with a ragged last block, a tail, and a NaN.
    k5, k6 = jax.random.split(k2)
    pred3 = jax.random.normal(k5, (1, 2, 3000, 250), dtype=jnp.float32)
    pred3 = pred3.at[0, 1, 1234, 111].set(jnp.nan)
    target3 = jax.random.bernoulli(k6, 0.5, (1, 2, 3000, 250)).astype(jnp.float32)
    out3 = jax.block_until_ready(focal_loss(pred3, target3, gamma=gamma))
    ref3 = focal_loss_ref(pred3, target3, gamma=gamma)
    assert jnp.allclose(out3, ref3, rtol=1e-4, atol=1e-6), (out3, ref3)

    print("KERNEL_OK")
</pallas_src>

<mosaic_0001>
module attributes {stable_mosaic.version = 11 : i64} {
  func.func @_focal_kernel(%arg0: i32, %arg1: memref<16x128xf32, #tpu.memory_space<vmem>>, %arg2: memref<16x128xf32, #tpu.memory_space<vmem>>, %arg3: memref<1x1x128xf32, #tpu.memory_space<vmem>>, %arg4: memref<1x1x128xi32, #tpu.memory_space<vmem>>) attributes {dimension_semantics = [#tpu.dimension_semantics<parallel>], iteration_bounds = array<i64: 1>, scalar_prefetch = 0 : i64, scratch_operands = 0 : i64, tpu.core_type = #tpu.core_type<tc>, window_params = [{transform_indices = @transform_0, window_bounds = array<i64: 16, 128>}, {transform_indices = @transform_1, window_bounds = array<i64: 16, 128>}, {transform_indices = @transform_2, window_bounds = array<i64: 1, 1, 128>}, {transform_indices = @transform_3, window_bounds = array<i64: 1, 1, 128>}]} {
    %c0 = arith.constant 0 : index
    %c0_0 = arith.constant 0 : index
    %0 = vector.load %arg1[%c0, %c0_0] : memref<16x128xf32, #tpu.memory_space<vmem>>, vector<16x128xf32>
    %c0_1 = arith.constant 0 : index
    %c0_2 = arith.constant 0 : index
    %1 = vector.load %arg2[%c0_1, %c0_2] : memref<16x128xf32, #tpu.memory_space<vmem>>, vector<16x128xf32>
    %2 = math.absf %0 : vector<16x128xf32>
    %cst = arith.constant 0.000000e+00 : f32
    %3 = vector.broadcast %cst : f32 to vector<16x128xf32>
    %4 = arith.subf %3, %2 : vector<16x128xf32>
    %5 = math.exp %4 : vector<16x128xf32>
    %cst_3 = arith.constant 0.000000e+00 : f32
    %6 = vector.broadcast %cst_3 : f32 to vector<16x128xf32>
    %7 = arith.maximumf %0, %6 : vector<16x128xf32>
    %8 = arith.mulf %0, %1 : vector<16x128xf32>
    %9 = arith.subf %7, %8 : vector<16x128xf32>
    %10 = math.log1p %5 : vector<16x128xf32>
    %11 = arith.addf %9, %10 : vector<16x128xf32>
    %cst_4 = arith.constant 1.000000e+00 : f32
    %12 = vector.broadcast %cst_4 : f32 to vector<16x128xf32>
    %13 = arith.addf %12, %5 : vector<16x128xf32>
    %14 = tpu.reciprocal %13 {approx = true} : vector<16x128xf32> -> vector<16x128xf32>
    %15 = arith.mulf %13, %14 : vector<16x128xf32>
    %cst_5 = arith.constant 2.000000e+00 : f32
    %16 = vector.broadcast %cst_5 : f32 to vector<16x128xf32>
    %17 = arith.subf %16, %15 : vector<16x128xf32>
    %18 = arith.mulf %14, %17 : vector<16x128xf32>
    %cst_6 = arith.constant 0.000000e+00 : f32
    %19 = vector.broadcast %cst_6 : f32 to vector<16x128xf32>
    %20 = arith.cmpf oge, %0, %19 : vector<16x128xf32>
    %cst_7 = arith.constant 1.000000e+00 : f32
    %21 = vector.broadcast %cst_7 : f32 to vector<16x128xf32>
    %22 = arith.subf %21, %18 : vector<16x128xf32>
    %23 = arith.select %20, %18, %22 : vector<16x128xi1>, vector<16x128xf32>
    %24 = arith.addf %23, %1 : vector<16x128xf32>
    %25 = arith.mulf %23, %1 : vector<16x128xf32>
    %cst_8 = arith.constant 2.000000e+00 : f32
    %26 = vector.broadcast %cst_8 : f32 to vector<16x128xf32>
    %27 = arith.mulf %26, %25 : vector<16x128xf32>
    %28 = arith.subf %24, %27 : vector<16x128xf32>
    %29 = arith.mulf %28, %28 : vector<16x128xf32>
    %30 = arith.mulf %11, %29 : vector<16x128xf32>
    %31 = arith.cmpf one, %30, %30 : vector<16x128xf32>
    %cst_9 = arith.constant dense<true> : vector<16x128xi1>
    %32 = arith.xori %31, %cst_9 : vector<16x128xi1>
    %cst_10 = arith.constant 0.000000e+00 : f32
    %33 = vector.broadcast %cst_10 : f32 to vector<16x128xf32>
    %34 = arith.select %32, %30, %33 : vector<16x128xi1>, vector<16x128xf32>
    %cst_11 = arith.constant dense<0.000000e+00> : vector<128xf32>
    %35 = vector.multi_reduction <add>, %34, %cst_11 [0] : vector<16x128xf32> to vector<128xf32>
    %36 = vector.shape_cast %35 : vector<128xf32> to vector<1x128xf32>
    %37 = vector.shape_cast %36 : vector<1x128xf32> to vector<1x1x128xf32>
    %c0_12 = arith.constant 0 : index
    %c0_13 = arith.constant 0 : index
    %c0_14 = arith.constant 0 : index
    %38 = vector.load %arg3[%c0_12, %c0_13, %c0_14] : memref<1x1x128xf32, #tpu.memory_space<vmem>>, vector<1x1x128xf32>
    tpu.vector_store %arg3[%c0_12, %c0_13, %c0_14], %37 {strides = array<i32>} : memref<1x1x128xf32, #tpu.memory_space<vmem>>, vector<1x1x128xf32>,
    %39 = arith.extui %32 : vector<16x128xi1> to vector<16x128xi32>
    %cst_15 = arith.constant dense<0> : vector<128xi32>
    %40 = vector.multi_reduction <add>, %39, %cst_15 [0] : vector<16x128xi32> to vector<128xi32>
    %41 = vector.shape_cast %40 : vector<128xi32> to vector<1x128xi32>
    %42 = vector.shape_cast %41 : vector<1x128xi32> to vector<1x1x128xi32>
    %c0_16 = arith.constant 0 : index
    %c0_17 = arith.constant 0 : index
    %c0_18 = arith.constant 0 : index
    %43 = vector.load %arg4[%c0_16, %c0_17, %c0_18] : memref<1x1x128xi32, #tpu.memory_space<vmem>>, vector<1x1x128xi32>
    tpu.vector_store %arg4[%c0_16, %c0_17, %c0_18], %42 {strides = array<i32>} : memref<1x1x128xi32, #tpu.memory_space<vmem>>, vector<1x1x128xi32>,
    return
  }
  func.func @transform_0(%arg0: i32) -> (i32, i32) {
    %c0_i32 = arith.constant 0 : i32
    %c0_i32_0 = arith.constant 0 : i32
    return %arg0, %c0_i32 : i32, i32
  }
  func.func @transform_1(%arg0: i32) -> (i32, i32) {
    %c0_i32 = arith.constant 0 : i32
    %c0_i32_0 = arith.constant 0 : i32
    return %arg0, %c0_i32 : i32, i32
  }
  func.func @transform_2(%arg0: i32) -> (i32, i32, i32) {
    %c0_i32 = arith.constant 0 : i32
    %c0_i32_0 = arith.constant 0 : i32
    %c0_i32_1 = arith.constant 0 : i32
    return %arg0, %c0_i32, %c0_i32_0 : i32, i32, i32
  }
  func.func @transform_3(%arg0: i32) -> (i32, i32, i32) {
    %c0_i32 = arith.constant 0 : i32
    %c0_i32_0 = arith.constant 0 : i32
    %c0_i32_1 = arith.constant 0 : i32
    return %arg0, %c0_i32, %c0_i32_0 : i32, i32, i32
  }
}

</mosaic_0001>

<llo_original>
// kernel: tpu_custom_call.1
$region0: #{tpu_custom_call.1}
  #allocation0 [shape = 'u32[]', space=smem, size = 0x4, offset = 0x4, fixed_abs, tag = 'smem constant byte address 0x4 - core index']
  #allocation1 [shape = 'u32[144,128]{1,0:T(1,128)}', space=vmem, size = 0x12000, scoped, tag = 'internal scratch']
  %s0 = inlined_call_operand.hbm [shape: f32[16,128], index: 0, kind: input, shape index: {}]
  %s1 = inlined_call_operand.hbm [shape: f32[16,128], index: 1, kind: input, shape index: {}]
  %s2 = inlined_call_operand.hbm [shape: f32[1,1,128], index: 2, kind: output, shape index: {0}]
  %s3 = inlined_call_operand.hbm [shape: s32[1,1,128], index: 3, kind: output, shape index: {1}]
  %4 = xla_tuple %s2, %s3
  %s5 = sld [smem:[#allocation0]]
  $region34: #{tpu_custom_call.1} parent=0
    _
  %s7 = ssub.s32 1, %s5
  %s8 = scalar_select 0, %s7, %s5
  $region1: #{tpu_custom_call.1} parent=0
    #allocation2 [shape = 'u8[8192]{0}', space=vmem, size = 0x2000, scoped, tag = 'input window, operand 0, single buffered']
    #allocation3 [shape = 's32[1]{0}', space=sflag, size = 0x4, scoped, tag = 'scoped memory for tpu_custom_call.1']
    #allocation4 [shape = 's32[1]{0}', space=sflag, size = 0x4, scoped, tag = 'scoped memory for tpu_custom_call.1']
    #allocation5 [shape = 'u8[8192]{0}', space=vmem, size = 0x2000, scoped, tag = 'input window, operand 1, single buffered']
    #allocation6 [shape = 's32[1]{0}', space=sflag, size = 0x4, scoped, tag = 'scoped memory for tpu_custom_call.1']
    #allocation7 [shape = 'u8[512]{0}', space=vmem, size = 0x400, scoped, tag = 'output window, operand 0, single buffered']
    #allocation8 [shape = 'u8[512]{0}', space=vmem, size = 0x400, scoped, tag = 'output window, operand 1, single buffered']
    #allocation9 [shape = 's32[1]{0}', space=sflag, size = 0x4, scoped, tag = 'scoped memory for tpu_custom_call.1']
    %9 = vsyncpa [#allocation3], 0
    %10 = vsyncpa [#allocation6], 0
    %11 = vsyncpa [#allocation4], 0
    %12 = vsyncpa [#allocation9], 0
    // Predicated region
    $region2: #{tpu_custom_call.1} parent=1 // pred_check
      _
    $region3: #{tpu_custom_call.1} parent=1 // pred_check_branch
      %14 = sbr.rel (0) target = $region5
    $region4: #{tpu_custom_call.1} parent=1 // pred_region
      %s16 = ssub.s32 256, 256
      %17 = vsyncadd [#allocation3], %s16
      %s18 = sshll.u32 [#allocation2], 4
      %s19 = int_to_ptr.vmem [resolvable:$true] %s18
      %24 = dma.hbm_to_vmem [thread:$0]  %s0, 256, %s19, [#allocation3], 128, 128, 8
    $region5: #{tpu_custom_call.1} parent=1 // pred_fallthru
      _
    // Predicated region
    $region6: #{tpu_custom_call.1} parent=1 // pred_check
      _
    $region7: #{tpu_custom_call.1} parent=1 // pred_check_branch
      %26 = sbr.rel (0) target = $region9
    $region8: #{tpu_custom_call.1} parent=1 // pred_region
      %s28 = ssub.s32 256, 256
      %29 = vsyncadd [#allocation6], %s28
      %s30 = sshll.u32 [#allocation5], 4
      %s31 = int_to_ptr.vmem [resolvable:$true] %s30
      %36 = dma.hbm_to_vmem [thread:$0]  %s1, 256, %s31, [#allocation6], 128, 128, 8
    $region9: #{tpu_custom_call.1} parent=1 // pred_fallthru
      _
    // Predicated region
    $region10: #{tpu_custom_call.1} parent=1 // pred_check
      _
    $region11: #{tpu_custom_call.1} parent=1 // pred_check_branch
      %38 = sbr.rel (0) target = $region13
    $region12: #{tpu_custom_call.1} parent=1 // pred_region
      %39 = dma.done [#allocation3], 256
    $region13: #{tpu_custom_call.1} parent=1 // pred_fallthru
      _
    // Predicated region
    $region14: #{tpu_custom_call.1} parent=1 // pred_check
      _
    $region15: #{tpu_custom_call.1} parent=1 // pred_check_branch
      %41 = sbr.rel (0) target = $region17
    $region16: #{tpu_custom_call.1} parent=1 // pred_region
      %42 = dma.done [#allocation6], 256
    $region17: #{tpu_custom_call.1} parent=1 // pred_fallthru
      _
    %v43 = vld [vmem:[#allocation2] sm:$0xff]
    %v44 = vld [vmem:[#allocation2 + $0x8] sm:$0xff]
    %v45 = vld [vmem:[#allocation5] sm:$0xff]
    %v46 = vld [vmem:[#allocation5 + $0x8] sm:$0xff]
    %v47 = vand.u32 2147483647, %v43
    %v48 = vand.u32 2147483647, %v44
    %v49 = vsub.f32 0.0, %v47
    %v50 = vsub.f32 0.0, %v48
    %v51 = vmul.f32 %v49, 1.442695
    %v52 = vpow.pop %v51
    %v53 = vmul.f32 %v50, 1.442695
    %v54 = vpow.pop %v53
    %v55 = vmax.f32 %v43, 0.0
    %v56 = vmax.f32 %v44, 0.0
    %v57 = vmul.f32 %v43, %v45
    %v58 = vmul.f32 %v44, %v46
    %v59 = vsub.f32 %v55, %v57
    %v60 = vsub.f32 %v56, %v58
    %v61 = vadd.f32 %v52, 1.0
    %v62 = vlog2.pop %v61
    %v63 = vmul.f32 %v62, 0.6931472
    %v64 = vmul.f32 -0.5, %v52
    %v65 = vadd.f32 %v64, 1.0
    %v66 = vmul.f32 %v65, %v52
    %v67 = vand.u32 2147483647, %v52
    %vm68 = vcmp.lt.f32.partialorder %v67, 0.0004427343
    %v69 = vsel %vm68, %v66, %v63
    %v70 = vadd.f32 %v54, 1.0
    %v71 = vlog2.pop %v70
    %v72 = vmul.f32 %v71, 0.6931472
    %v73 = vmul.f32 -0.5, %v54
    %v74 = vadd.f32 %v73, 1.0
    %v75 = vmul.f32 %v74, %v54
    %v76 = vand.u32 2147483647, %v54
    %vm77 = vcmp.lt.f32.partialorder %v76, 0.0004427343
    %v78 = vsel %vm77, %v75, %v72
    %v79 = vadd.f32 %v59, %v69
    %v80 = vadd.f32 %v60, %v78
    %v81 = vadd.f32 %v52, 1.0
    %v82 = vadd.f32 %v54, 1.0
    %v83 = vrcp.pop %v81
    %v84 = vrcp.pop %v82
    %v85 = vmul.f32 %v81, %v83
    %v86 = vmul.f32 %v82, %v84
    %v87 = vsub.f32 2.0, %v85
    %v88 = vsub.f32 2.0, %v86
    %v89 = vmul.f32 %v83, %v87
    %v90 = vmul.f32 %v84, %v88
    %vm91 = vcmp.ge.f32.partialorder %v43, 0.0
    %vm92 = vcmp.ge.f32.partialorder %v44, 0.0
    %v93 = vsub.f32 1.0, %v89
    %v94 = vsub.f32 1.0, %v90
    %v95 = vsel %vm91, %v89, %v93
    %v96 = vsel %vm92, %v90, %v94
    %v97 = vadd.f32 %v95, %v45
    %v98 = vadd.f32 %v96, %v46
    %v99 = vmul.f32 %v95, %v45
    %v100 = vmul.f32 %v96, %v46
    %v101 = vmul.f32 %v99, 2.0
    %v102 = vmul.f32 %v100, 2.0
    %v103 = vsub.f32 %v97, %v101
    %v104 = vsub.f32 %v98, %v102
    %v105 = vmul.f32 %v103, %v103
    %v106 = vmul.f32 %v104, %v104
    %v107 = vmul.f32 %v79, %v105
    %v108 = vmul.f32 %v80, %v106
    %vm109 = vcmp.ne.f32.partialorder %v107, %v107
    %vm110 = vcmp.ne.f32.partialorder %v108, %v108
    %vm111 = vmxor %vm109, 1
    %vm112 = vmxor %vm110, 1
    %v113 = vsel %vm111, %v107, 0.0
    %v114 = vsel %vm112, %v108, 0.0
    %v115 = vadd.f32 %v113, %v114
    %v116 = vrot.slane %v115, 4
    %v117 = vadd.f32 %v115, %v116
    %v118 = vrot.slane %v117, 2
    %v119 = vadd.f32 %v117, %v118
    %v120 = vrot.slane %v119, 1
    %v121 = vadd.f32 %v119, %v120
    %122 = vst [vmem:[#allocation7] sm:$0x1] %v121
    %v123 = vsel %vm111, 1, 0
    %v124 = vsel %vm112, 1, 0
    %v125 = vadd.s32 %v123, %v124
    %v126 = vrot.slane %v125, 4
    %v127 = vadd.s32 %v125, %v126
    %v128 = vrot.slane %v127, 2
    %v129 = vadd.s32 %v127, %v128
    %v130 = vrot.slane %v129, 1
    %v131 = vadd.s32 %v129, %v130
    %132 = vst [vmem:[#allocation8] sm:$0x1] %v131
    // Predicated region
    $region18: #{tpu_custom_call.1} parent=1 // pred_check
      _
    $region19: #{tpu_custom_call.1} parent=1 // pred_check_branch
      %134 = sbr.rel (0) target = $region21
    $region20: #{tpu_custom_call.1} parent=1 // pred_region
      %s136 = ssub.s32 16, 16
      %137 = vsyncadd [#allocation4], %s136
      %s139 = sshll.u32 [#allocation7], 4
      %s140 = int_to_ptr.vmem [resolvable:$true] %s139
      %142 = dma.vmem_to_hbm [thread:$0]  %s140, 16, %s2, [#allocation4]
    $region21: #{tpu_custom_call.1} parent=1 // pred_fallthru
      _
    // Predicated region
    $region22: #{tpu_custom_call.1} parent=1 // pred_check
      _
    $region23: #{tpu_custom_call.1} parent=1 // pred_check_branch
      %144 = sbr.rel (0) target = $region25
    $region24: #{tpu_custom_call.1} parent=1 // pred_region
      %s146 = ssub.s32 16, 16
      %147 = vsyncadd [#allocation9], %s146
      %s149 = sshll.u32 [#allocation8], 4
      %s150 = int_to_ptr.vmem [resolvable:$true] %s149
      %152 = dma.vmem_to_hbm [thread:$0]  %s150, 16, %s3, [#allocation9]
    $region25: #{tpu_custom_call.1} parent=1 // pred_fallthru
      _
    // Predicated region
    $region26: #{tpu_custom_call.1} parent=1 // pred_check
      _
    $region27: #{tpu_custom_call.1} parent=1 // pred_check_branch
      %154 = sbr.rel (0) target = $region29
    $region28: #{tpu_custom_call.1} parent=1 // pred_region
      %155 = dma.done [#allocation4], 16
    $region29: #{tpu_custom_call.1} parent=1 // pred_fallthru
      _
    // Predicated region
    $region30: #{tpu_custom_call.1} parent=1 // pred_check
      _
    $region31: #{tpu_custom_call.1} parent=1 // pred_check_branch
      %157 = sbr.rel (0) target = $region33
    $region32: #{tpu_custom_call.1} parent=1 // pred_region
      %158 = dma.done [#allocation9], 16
    $region33: #{tpu_custom_call.1} parent=1 // pred_fallthru
      _
    %159 = vsyncpa [#allocation3], 1
    %160 = vsyncpa [#allocation6], 1
    %161 = vsyncpa [#allocation4], 1
    %162 = vsyncpa [#allocation9], 1

</llo_original>
